<compile_context>
chip_gen: v5e
topology: v5e:2x2
jax: 0.10.0
libtpu: 0.0.40
codegen_flags: <defaults>
</compile_context>

<pallas_src>
import random
from functools import partial

import jax
import jax.numpy as jnp
from jax.experimental import pallas as pl
from jax.experimental.pallas import tpu as pltpu

EPS = 1e-6


def _dsu_kernel(x_ref, eps_mu_ref, eps_std_ref, o_ref):
    # x_ref/o_ref: (B, C_TILE, HW);  eps_*_ref: (B, C_TILE, 1) standard-normal noise.
    xf = x_ref[...].astype(jnp.float32)
    B = xf.shape[0]
    HW = xf.shape[2]

    # One-pass spatial moments (lane reductions), kept as (B, C_TILE, 1) so no relayout
    # is needed for the batch-axis statistics or the broadcast back over HW.
    s1 = jnp.sum(xf, axis=-1, keepdims=True)
    s2 = jnp.sum(xf * xf, axis=-1, keepdims=True)
    mean = s1 * (1.0 / HW)
    # Unbiased spatial variance (torch .var default).  sumsq form avoids materializing a
    # full (B, C_TILE, HW) diff temporary; clamp guards tiny negative from cancellation.
    # TODO(synk): if activations have |mean| >> spread, switch back to the diff form.
    var = jnp.maximum((s2 - mean * s1) * (1.0 / (HW - 1)), 0.0)
    std = jnp.sqrt(var + EPS)

    # Batch-dimension unbiased variance of the per-(B,C) stats (self.sqrtvar), reduced
    # over axis 0 on the (B, C_TILE, 1) layout -> plain VPU adds, no sublane reduce.
    mu_bar = jnp.mean(mean, axis=0, keepdims=True)
    sqrtvar_mu = jnp.sqrt(
        jnp.sum((mean - mu_bar) ** 2, axis=0, keepdims=True) * (1.0 / (B - 1)) + EPS)
    std_bar = jnp.mean(std, axis=0, keepdims=True)
    sqrtvar_std = jnp.sqrt(
        jnp.sum((std - std_bar) ** 2, axis=0, keepdims=True) * (1.0 / (B - 1)) + EPS)

    # Reparameterize: mu + eps * std  (noise supplied from outside).
    beta = mean + eps_mu_ref[...] * sqrtvar_mu        # (B, C_TILE, 1)
    gamma = std + eps_std_ref[...] * sqrtvar_std      # (B, C_TILE, 1)

    # Single per-(B,C) reciprocal on the EUP slot; one Newton step restores f32 accuracy.
    inv_std = pl.reciprocal(std, approx=True)
    inv_std = inv_std * (2.0 - std * inv_std)

    # Fold normalize + restyle into one affine: (x - mean)/std * gamma + beta.
    scale = gamma * inv_std                           # (B, C_TILE, 1)
    shift = beta - mean * scale                       # (B, C_TILE, 1)
    o_ref[...] = (xf * scale + shift).astype(o_ref.dtype)


def _choose_c_tile(B, C, HW, itemsize, target_bytes=2 << 20):
    """Largest multiple-of-8 divisor of C whose f32 working block fits ~target_bytes."""
    if C % 8 != 0:
        return C                      # small / odd C: single full-C block
    per_channel = B * HW * max(int(itemsize), 4)      # f32 temporaries dominate
    best = 8
    t = 8
    while t <= C:
        if C % t == 0:
            if t * per_channel <= target_bytes:
                best = t
            else:
                break
        t += 8
    return best


@partial(jax.jit, static_argnames=("c_tile",))
def _dsu_pallas(x_flat, eps_mu, eps_std, *, c_tile):
    B, C, HW = x_flat.shape
    grid = (C // c_tile,)

    # Size scoped VMEM from the block (2x double-buffered in/out + f32 temporaries).
    block_bytes = B * c_tile * HW * x_flat.dtype.itemsize
    f32_bytes = B * c_tile * HW * 4
    vmem_limit = int(min(64 << 20, max(16 << 20, 4 * block_bytes + 4 * f32_bytes + (1 << 20))))

    return pl.pallas_call(
        _dsu_kernel,
        out_shape=jax.ShapeDtypeStruct((B, C, HW), x_flat.dtype),
        grid=grid,
        in_specs=[
            pl.BlockSpec((B, c_tile, HW), lambda i: (0, i, 0)),
            pl.BlockSpec((B, c_tile, 1), lambda i: (0, i, 0)),
            pl.BlockSpec((B, c_tile, 1), lambda i: (0, i, 0)),
        ],
        out_specs=pl.BlockSpec((B, c_tile, HW), lambda i: (0, i, 0)),
        compiler_params=pltpu.CompilerParams(
            dimension_semantics=("parallel",),   # channel tiles are independent
            vmem_limit_bytes=vmem_limit,
        ),
    )(x_flat, eps_mu, eps_std)


def dsu_forward(x, key, p=0.5, training=True, c_tile=None):
    """DSU.forward equivalent. Host-side stochastic gate + Gaussian noise from `key`."""
    if not training:
        return x
    # TODO(synk): PyTorch gates with python random.random(); we do the same on the host
    # (no device sync, no tracer issues), so the gate is not derived from `key`.
    if random.random() > p:
        return x

    B, C, H, W = x.shape
    HW = H * W
    # TODO(synk): if HW is not a multiple of 128, stores are masked (correct but slower);
    # masked-padded spatial reductions would be needed to pad HW without biasing stats.
    k_mu, k_std = jax.random.split(key)
    eps_mu = jax.random.normal(k_mu, (B, C), dtype=jnp.float32).reshape(B, C, 1)
    eps_std = jax.random.normal(k_std, (B, C), dtype=jnp.float32).reshape(B, C, 1)
    x_flat = x.reshape(B, C, HW)

    if c_tile is None:
        c_tile = _choose_c_tile(B, C, HW, x.dtype.itemsize)
    c_tile = int(c_tile)
    if C % c_tile != 0 or (c_tile % 8 != 0 and c_tile != C):
        c_tile = C

    out = _dsu_pallas(x_flat, eps_mu, eps_std, c_tile=c_tile)
    return out.reshape(B, C, H, W)


def _dsu_reference(x, eps_mu, eps_std):
    """Pure-JAX reference mirroring the PyTorch math (for validation)."""
    xf = x.astype(jnp.float32)
    mean = xf.mean(axis=(2, 3))
    var = xf.var(axis=(2, 3), ddof=1)
    std = jnp.sqrt(var + EPS)
    sqrtvar_mu = jnp.sqrt(mean.var(axis=0, keepdims=True, ddof=1) + EPS)
    sqrtvar_std = jnp.sqrt(std.var(axis=0, keepdims=True, ddof=1) + EPS)
    beta = mean + eps_mu * sqrtvar_mu
    gamma = std + eps_std * sqrtvar_std
    xn = (xf - mean[:, :, None, None]) / std[:, :, None, None]
    return (xn * gamma[:, :, None, None] + beta[:, :, None, None]).astype(x.dtype)


if __name__ == "__main__":
    key = jax.random.PRNGKey(0)
    k_x, k_fwd = jax.random.split(key)

    # Primary shape: exercises the channel-tiled pipeline (C=16, C_TILE=8 -> 2 grid steps).
    B, C, H, W = 2, 16, 16, 16
    x = jax.random.normal(k_x, (B, C, H, W), dtype=jnp.float32)
    out = dsu_forward(x, k_fwd, p=1.0, training=True, c_tile=8)  # p=1.0 -> gate always on
    out = jax.block_until_ready(out)

    k_mu, k_std = jax.random.split(k_fwd)
    eps_mu = jax.random.normal(k_mu, (B, C), dtype=jnp.float32)
    eps_std = jax.random.normal(k_std, (B, C), dtype=jnp.float32)
    ref = _dsu_reference(x, eps_mu, eps_std)
    assert out.shape == x.shape and out.dtype == x.dtype
    assert jnp.allclose(out, ref, atol=5e-4, rtol=5e-4), "mismatch vs reference (tiled)"

    # Secondary small shape (C=4 < 8 -> falls back to a single full-C block).
    k_x2, k_fwd2 = jax.random.split(jax.random.PRNGKey(1))
    B2, C2, H2, W2 = 2, 4, 16, 16
    x2 = jax.random.normal(k_x2, (B2, C2, H2, W2), dtype=jnp.float32)
    out2 = jax.block_until_ready(dsu_forward(x2, k_fwd2, p=1.0, training=True))
    k_mu2, k_std2 = jax.random.split(k_fwd2)
    ref2 = _dsu_reference(
        x2,
        jax.random.normal(k_mu2, (B2, C2), dtype=jnp.float32),
        jax.random.normal(k_std2, (B2, C2), dtype=jnp.float32),
    )
    assert jnp.allclose(out2, ref2, atol=5e-4, rtol=5e-4), "mismatch vs reference (small)"

    # Eval mode is a no-op passthrough.
    assert jnp.array_equal(dsu_forward(x, k_fwd, training=False), x)

    print("KERNEL_OK")
</pallas_src>

<mosaic_0001>
module attributes {stable_mosaic.version = 11 : i64} {
  func.func @_dsu_kernel(%arg0: i32, %arg1: memref<2x8x256xf32, #tpu.memory_space<vmem>>, %arg2: memref<2x8x1xf32, #tpu.memory_space<vmem>>, %arg3: memref<2x8x1xf32, #tpu.memory_space<vmem>>, %arg4: memref<2x8x256xf32, #tpu.memory_space<vmem>>) attributes {dimension_semantics = [#tpu.dimension_semantics<parallel>], iteration_bounds = array<i64: 2>, scalar_prefetch = 0 : i64, scratch_operands = 0 : i64, tpu.core_type = #tpu.core_type<tc>, window_params = [{transform_indices = @transform_0, window_bounds = array<i64: 2, 8, 256>}, {transform_indices = @transform_1, window_bounds = array<i64: 2, 8, 1>}, {transform_indices = @transform_2, window_bounds = array<i64: 2, 8, 1>}, {transform_indices = @transform_3, window_bounds = array<i64: 2, 8, 256>}]} {
    %c0 = arith.constant 0 : index
    %c0_0 = arith.constant 0 : index
    %c0_1 = arith.constant 0 : index
    %0 = vector.load %arg1[%c0, %c0_0, %c0_1] : memref<2x8x256xf32, #tpu.memory_space<vmem>>, vector<2x8x256xf32>
    %cst = arith.constant dense<0.000000e+00> : vector<2x8xf32>
    %1 = vector.multi_reduction <add>, %0, %cst [2] : vector<2x8x256xf32> to vector<2x8xf32>
    %2 = vector.shape_cast %1 : vector<2x8xf32> to vector<2x8x1xf32>
    %3 = arith.mulf %0, %0 : vector<2x8x256xf32>
    %cst_2 = arith.constant dense<0.000000e+00> : vector<2x8xf32>
    %4 = vector.multi_reduction <add>, %3, %cst_2 [2] : vector<2x8x256xf32> to vector<2x8xf32>
    %5 = vector.shape_cast %4 : vector<2x8xf32> to vector<2x8x1xf32>
    %cst_3 = arith.constant 3.906250e-03 : f32
    %6 = vector.broadcast %cst_3 : f32 to vector<2x8x1xf32>
    %7 = arith.mulf %2, %6 : vector<2x8x1xf32>
    %8 = arith.mulf %7, %2 : vector<2x8x1xf32>
    %9 = arith.subf %5, %8 : vector<2x8x1xf32>
    %cst_4 = arith.constant 0.00392156886 : f32
    %10 = vector.broadcast %cst_4 : f32 to vector<2x8x1xf32>
    %11 = arith.mulf %9, %10 : vector<2x8x1xf32>
    %cst_5 = arith.constant 0.000000e+00 : f32
    %12 = vector.broadcast %cst_5 : f32 to vector<2x8x1xf32>
    %13 = arith.maximumf %11, %12 : vector<2x8x1xf32>
    %cst_6 = arith.constant 9.99999997E-7 : f32
    %14 = vector.broadcast %cst_6 : f32 to vector<2x8x1xf32>
    %15 = arith.addf %13, %14 : vector<2x8x1xf32>
    %16 = math.sqrt %15 : vector<2x8x1xf32>
    %cst_7 = arith.constant dense<0.000000e+00> : vector<8x1xf32>
    %17 = vector.multi_reduction <add>, %7, %cst_7 [0] : vector<2x8x1xf32> to vector<8x1xf32>
    %18 = vector.shape_cast %17 : vector<8x1xf32> to vector<1x8x1xf32>
    %cst_8 = arith.constant 2.000000e+00 : f32
    %19 = vector.broadcast %cst_8 : f32 to vector<1x8x1xf32>
    %20 = arith.divf %18, %19 : vector<1x8x1xf32>
    %21 = vector.broadcast %20 : vector<1x8x1xf32> to vector<2x8x1xf32>
    %22 = arith.subf %7, %21 : vector<2x8x1xf32>
    %23 = arith.mulf %22, %22 : vector<2x8x1xf32>
    %cst_9 = arith.constant dense<0.000000e+00> : vector<8x1xf32>
    %24 = vector.multi_reduction <add>, %23, %cst_9 [0] : vector<2x8x1xf32> to vector<8x1xf32>
    %25 = vector.shape_cast %24 : vector<8x1xf32> to vector<1x8x1xf32>
    %cst_10 = arith.constant 1.000000e+00 : f32
    %26 = vector.broadcast %cst_10 : f32 to vector<1x8x1xf32>
    %27 = arith.mulf %25, %26 : vector<1x8x1xf32>
    %cst_11 = arith.constant 9.99999997E-7 : f32
    %28 = vector.broadcast %cst_11 : f32 to vector<1x8x1xf32>
    %29 = arith.addf %27, %28 : vector<1x8x1xf32>
    %30 = math.sqrt %29 : vector<1x8x1xf32>
    %cst_12 = arith.constant dense<0.000000e+00> : vector<8x1xf32>
    %31 = vector.multi_reduction <add>, %16, %cst_12 [0] : vector<2x8x1xf32> to vector<8x1xf32>
    %32 = vector.shape_cast %31 : vector<8x1xf32> to vector<1x8x1xf32>
    %cst_13 = arith.constant 2.000000e+00 : f32
    %33 = vector.broadcast %cst_13 : f32 to vector<1x8x1xf32>
    %34 = arith.divf %32, %33 : vector<1x8x1xf32>
    %35 = vector.broadcast %34 : vector<1x8x1xf32> to vector<2x8x1xf32>
    %36 = arith.subf %16, %35 : vector<2x8x1xf32>
    %37 = arith.mulf %36, %36 : vector<2x8x1xf32>
    %cst_14 = arith.constant dense<0.000000e+00> : vector<8x1xf32>
    %38 = vector.multi_reduction <add>, %37, %cst_14 [0] : vector<2x8x1xf32> to vector<8x1xf32>
    %39 = vector.shape_cast %38 : vector<8x1xf32> to vector<1x8x1xf32>
    %cst_15 = arith.constant 1.000000e+00 : f32
    %40 = vector.broadcast %cst_15 : f32 to vector<1x8x1xf32>
    %41 = arith.mulf %39, %40 : vector<1x8x1xf32>
    %cst_16 = arith.constant 9.99999997E-7 : f32
    %42 = vector.broadcast %cst_16 : f32 to vector<1x8x1xf32>
    %43 = arith.addf %41, %42 : vector<1x8x1xf32>
    %44 = math.sqrt %43 : vector<1x8x1xf32>
    %c0_17 = arith.constant 0 : index
    %c0_18 = arith.constant 0 : index
    %c0_19 = arith.constant 0 : index
    %45 = vector.load %arg2[%c0_17, %c0_18, %c0_19] : memref<2x8x1xf32, #tpu.memory_space<vmem>>, vector<2x8x1xf32>
    %46 = vector.broadcast %30 : vector<1x8x1xf32> to vector<2x8x1xf32>
    %47 = arith.mulf %45, %46 : vector<2x8x1xf32>
    %48 = arith.addf %7, %47 : vector<2x8x1xf32>
    %c0_20 = arith.constant 0 : index
    %c0_21 = arith.constant 0 : index
    %c0_22 = arith.constant 0 : index
    %49 = vector.load %arg3[%c0_20, %c0_21, %c0_22] : memref<2x8x1xf32, #tpu.memory_space<vmem>>, vector<2x8x1xf32>
    %50 = vector.broadcast %44 : vector<1x8x1xf32> to vector<2x8x1xf32>
    %51 = arith.mulf %49, %50 : vector<2x8x1xf32>
    %52 = arith.addf %16, %51 : vector<2x8x1xf32>
    %53 = tpu.reciprocal %16 {approx = true} : vector<2x8x1xf32> -> vector<2x8x1xf32>
    %54 = arith.mulf %16, %53 : vector<2x8x1xf32>
    %cst_23 = arith.constant 2.000000e+00 : f32
    %55 = vector.broadcast %cst_23 : f32 to vector<2x8x1xf32>
    %56 = arith.subf %55, %54 : vector<2x8x1xf32>
    %57 = arith.mulf %53, %56 : vector<2x8x1xf32>
    %58 = arith.mulf %52, %57 : vector<2x8x1xf32>
    %59 = arith.mulf %7, %58 : vector<2x8x1xf32>
    %60 = arith.subf %48, %59 : vector<2x8x1xf32>
    %61 = vector.broadcast %58 : vector<2x8x1xf32> to vector<2x8x256xf32>
    %62 = arith.mulf %0, %61 : vector<2x8x256xf32>
    %63 = vector.broadcast %60 : vector<2x8x1xf32> to vector<2x8x256xf32>
    %64 = arith.addf %62, %63 : vector<2x8x256xf32>
    %c0_24 = arith.constant 0 : index
    %c0_25 = arith.constant 0 : index
    %c0_26 = arith.constant 0 : index
    %65 = vector.load %arg4[%c0_24, %c0_25, %c0_26] : memref<2x8x256xf32, #tpu.memory_space<vmem>>, vector<2x8x256xf32>
    tpu.vector_store %arg4[%c0_24, %c0_25, %c0_26], %64 {strides = array<i32>} : memref<2x8x256xf32, #tpu.memory_space<vmem>>, vector<2x8x256xf32>,
    return
  }
  func.func @transform_0(%arg0: i32) -> (i32, i32, i32) {
    %c0_i32 = arith.constant 0 : i32
    %c0_i32_0 = arith.constant 0 : i32
    %c0_i32_1 = arith.constant 0 : i32
    return %c0_i32, %arg0, %c0_i32_0 : i32, i32, i32
  }
  func.func @transform_1(%arg0: i32) -> (i32, i32, i32) {
    %c0_i32 = arith.constant 0 : i32
    %c0_i32_0 = arith.constant 0 : i32
    %c0_i32_1 = arith.constant 0 : i32
    return %c0_i32, %arg0, %c0_i32_0 : i32, i32, i32
  }
  func.func @transform_2(%arg0: i32) -> (i32, i32, i32) {
    %c0_i32 = arith.constant 0 : i32
    %c0_i32_0 = arith.constant 0 : i32
    %c0_i32_1 = arith.constant 0 : i32
    return %c0_i32, %arg0, %c0_i32_0 : i32, i32, i32
  }
  func.func @transform_3(%arg0: i32) -> (i32, i32, i32) {
    %c0_i32 = arith.constant 0 : i32
    %c0_i32_0 = arith.constant 0 : i32
    %c0_i32_1 = arith.constant 0 : i32
    return %c0_i32, %arg0, %c0_i32_0 : i32, i32, i32
  }
}

</mosaic_0001>

<llo_original>
// kernel: _dsu_pallas.1
$region0: #{_dsu_pallas.1}
  #allocation0 [shape = 'u32[]', space=smem, size = 0x4, offset = 0x4, fixed_abs, tag = 'smem constant byte address 0x4 - core index']
  #allocation1 [shape = 'u32[72,128]{1,0:T(1,128)}', space=vmem, size = 0x9000, scoped, tag = 'internal scratch']
  %s0 = inlined_call_operand.vmem [shape: f32[2,16,256], index: 0, kind: input, shape index: {}]
  %s1 = inlined_call_operand.vmem [shape: f32[2,16,1], index: 1, kind: input, shape index: {}]
  %s2 = inlined_call_operand.vmem [shape: f32[2,16,1], index: 2, kind: input, shape index: {}]
  %s3 = inlined_call_operand.hbm [shape: f32[2,16,256], index: 3, kind: output, shape index: {}]
  %s4 = sld [smem:[#allocation0]]
  $region144: #{_dsu_pallas.1} parent=0
    _
  %s6 = ssub.s32 1, %s4
  %s7 = scalar_select 0, %s6, %s4
  $region1: #{_dsu_pallas.1} parent=0
    #allocation2 [shape = 'u8[32768]{0}', space=vmem, size = 0x8000, scoped, tag = 'input window, operand 0']
    #allocation3 [shape = 'u8[16384]{0}', space=vmem, size = 0x4000, scoped, tag = 'input window, operand 1']
    #allocation4 [shape = 'u8[16384]{0}', space=vmem, size = 0x4000, scoped, tag = 'input window, operand 2']
    #allocation5 [shape = 'u8[32768]{0}', space=vmem, size = 0x8000, scoped, tag = 'output window, operand 0']
    #allocation6 [shape = 's32[2]{0}', space=sflag, size = 0x8, scoped, tag = 'scoped memory for _dsu_pallas.1']
    %8 = vsyncpa [#allocation6], 0
    %s9 = scalar_lea.sflag [#allocation6], 1
    %10 = vsyncpa %s9, 0
    loop: start=0, step=1, limit=4
    $region2: #{_dsu_pallas.1} parent=1 // loop_pre_header
      _
    $region3: #{_dsu_pallas.1} parent=1 // loop_header
      %s12 = sphi 0, %s16
      %p13 = scmp.ge.s32.totalorder %s12, 4
      %s22 = sphi 0, %s24
      %s25 = sphi 0, %s22
      %s26 = sphi 0, %s25
      %s42 = sphi 0, %s26
      %s48 = sphi 0, %s50
      %s51 = sphi 0, %s48
      %s52 = sphi 0, %s51
      %s68 = sphi 0, %s52
      %s74 = sphi 0, %s76
      %s77 = sphi 0, %s74
      %s78 = sphi 0, %s77
      %s94 = sphi 0, %s78
      %s100 = sphi 0, %s102
      %s103 = sphi 0, %s100
      %s104 = sphi 0, %s103
      %s120 = sphi 0, %s104
    $region4: #{_dsu_pallas.1} parent=1 // loop_header_branch
      %15 = sbr.rel (%p13) target = $region8
    $region5: #{_dsu_pallas.1} parent=1 // loop_body
      %s17 = ssub.s32 %s12, 1
      %s18 = ssub.s32 %s12, 2
      %s19 = sadd.s32 %s12, 1
      %s20 = ssub.s32 %s12, %s19
      %p21 = scmp.eq.s32.totalorder %s20, 0
      %s23 = sadd.s32 %s22, 1
      %s24 = scalar_select %p21, %s22, %s23
      %p27 = pneg %p21
      %p28 = scmp.eq.s32.totalorder %s12, 1
      %p29 = por %p27, %p28
      %p30 = scmp.ne.s32.totalorder %s22, %s25
      %p31 = scmp.eq.s32.totalorder %s12, 0
      %p32 = por %p30, %p31
      %p33 = scmp.ne.s32.totalorder %s22, %s25
      %p34 = scmp.eq.s32.totalorder %s17, 1
      %p35 = por %p33, %p34
      %p36 = scmp.ne.s32.totalorder %s25, %s26
      %p37 = scmp.eq.s32.totalorder %s17, 0
      %p38 = por %p36, %p37
      %p39 = scmp.ne.s32.totalorder %s25, %s26
      %p40 = scmp.eq.s32.totalorder %s18, 1
      %p41 = por %p39, %p40
      %p43 = scmp.ne.s32.totalorder %s26, %s42
      %p44 = scmp.eq.s32.totalorder %s18, 0
      %p45 = por %p43, %p44
      %s46 = ssub.s32 %s12, %s19
      %p47 = scmp.eq.s32.totalorder %s46, 0
      %s49 = sadd.s32 %s48, 1
      %s50 = scalar_select %p47, %s48, %s49
      %p53 = pneg %p47
      %p54 = scmp.eq.s32.totalorder %s12, 1
      %p55 = por %p53, %p54
      %p56 = scmp.ne.s32.totalorder %s48, %s51
      %p57 = scmp.eq.s32.totalorder %s12, 0
      %p58 = por %p56, %p57
      %p59 = scmp.ne.s32.totalorder %s48, %s51
      %p60 = scmp.eq.s32.totalorder %s17, 1
      %p61 = por %p59, %p60
      %p62 = scmp.ne.s32.totalorder %s51, %s52
      %p63 = scmp.eq.s32.totalorder %s17, 0
      %p64 = por %p62, %p63
      %p65 = scmp.ne.s32.totalorder %s51, %s52
      %p66 = scmp.eq.s32.totalorder %s18, 1
      %p67 = por %p65, %p66
      %p69 = scmp.ne.s32.totalorder %s52, %s68
      %p70 = scmp.eq.s32.totalorder %s18, 0
      %p71 = por %p69, %p70
      %s72 = ssub.s32 %s12, %s19
      %p73 = scmp.eq.s32.totalorder %s72, 0
      %s75 = sadd.s32 %s74, 1
      %s76 = scalar_select %p73, %s74, %s75
      %p79 = pneg %p73
      %p80 = scmp.eq.s32.totalorder %s12, 1
      %p81 = por %p79, %p80
      %p82 = scmp.ne.s32.totalorder %s74, %s77
      %p83 = scmp.eq.s32.totalorder %s12, 0
      %p84 = por %p82, %p83
      %p85 = scmp.ne.s32.totalorder %s74, %s77
      %p86 = scmp.eq.s32.totalorder %s17, 1
      %p87 = por %p85, %p86
      %p88 = scmp.ne.s32.totalorder %s77, %s78
      %p89 = scmp.eq.s32.totalorder %s17, 0
      %p90 = por %p88, %p89
      %p91 = scmp.ne.s32.totalorder %s77, %s78
      %p92 = scmp.eq.s32.totalorder %s18, 1
      %p93 = por %p91, %p92
      %p95 = scmp.ne.s32.totalorder %s78, %s94
      %p96 = scmp.eq.s32.totalorder %s18, 0
      %p97 = por %p95, %p96
      %s98 = ssub.s32 %s12, %s19
      %p99 = scmp.eq.s32.totalorder %s98, 0
      %s101 = sadd.s32 %s100, 1
      %s102 = scalar_select %p99, %s100, %s101
      %p105 = pneg %p99
      %p106 = scmp.eq.s32.totalorder %s12, 1
      %p107 = por %p105, %p106
      %p108 = scmp.ne.s32.totalorder %s100, %s103
      %p109 = scmp.eq.s32.totalorder %s12, 0
      %p110 = por %p108, %p109
      %p111 = scmp.ne.s32.totalorder %s100, %s103
      %p112 = scmp.eq.s32.totalorder %s17, 1
      %p113 = por %p111, %p112
      %p114 = scmp.ne.s32.totalorder %s103, %s104
      %p115 = scmp.eq.s32.totalorder %s17, 0
      %p116 = por %p114, %p115
      %p117 = scmp.ne.s32.totalorder %s103, %s104
      %p118 = scmp.eq.s32.totalorder %s18, 1
      %p119 = por %p117, %p118
      %p121 = scmp.ne.s32.totalorder %s104, %s120
      %p122 = scmp.eq.s32.totalorder %s18, 0
      %p123 = por %p121, %p122
      %p124 = scmp.le.s32.totalorder 1, %s12
      %p125 = scmp.lt.s32.totalorder %s12, 3
      %p126 = pnand %p124, %p125
      %p127 = pneg %p126
      // Predicated region
      $region9: #{_dsu_pallas.1} parent=5 // pred_check
        _
      $region10: #{_dsu_pallas.1} parent=5 // pred_check_branch
        %129 = sbr.rel (%p126) target = $region12
      $region11: #{_dsu_pallas.1} parent=5 // pred_region
        %s130 = ssub.s32 %s12, 1
      $region12: #{_dsu_pallas.1} parent=5 // pred_fallthru
        _
      %p131 = scmp.lt.s32.totalorder %s12, 2
      // Predicated region
      $region13: #{_dsu_pallas.1} parent=5 // pred_check
        %p132 = pneg %p131
      $region14: #{_dsu_pallas.1} parent=5 // pred_check_branch
        %134 = sbr.rel (%p132) target = $region16
      $region15: #{_dsu_pallas.1} parent=5 // pred_region
        // Predicated region
        $region17: #{_dsu_pallas.1} parent=15 // pred_check
          %p135 = pneg %p32
        $region18: #{_dsu_pallas.1} parent=15 // pred_check_branch
          %137 = sbr.rel (%p135) target = $region20
        $region19: #{_dsu_pallas.1} parent=15 // pred_region
          %s138 = sand.u32 %s22, 1
          %s139 = sand.u32 %s22, 1
          %s140 = smul.addr %s139, 32
          %s141 = scalar_lea.vmem [#allocation2], %s140
          %s142 = smul.addr %s12, 2
          %s143 = smul.addr %s142, 8
          %s144 = scalar_lea.vmem %s0, %s143
          // Predicated region
          $region21: #{_dsu_pallas.1} parent=19 // pred_check
            _
          $region22: #{_dsu_pallas.1} parent=19 // pred_check_branch
            %146 = sbr.rel (0) target = $region24
          $region23: #{_dsu_pallas.1} parent=19 // pred_region
            // Predicated region
            $region25: #{_dsu_pallas.1} parent=23 // pred_check
              _
            $region26: #{_dsu_pallas.1} parent=23 // pred_check_branch
              %148 = sbr.rel (0) target = $region28
            $region27: #{_dsu_pallas.1} parent=23 // pred_region
              loop: start=0, step=1, limit=1
              $region29: #{_dsu_pallas.1} parent=27 // loop_pre_header
                _
              $region30: #{_dsu_pallas.1} parent=27 // loop_header
                %s150 = sphi 0, %s154
                %p151 = scmp.ge.s32.totalorder %s150, 1
                %s155 = sphi %s144, %s144
                %s156 = sphi %s141, %s141
              $region31: #{_dsu_pallas.1} parent=27 // loop_header_branch
                %153 = sbr.rel (%p151) target = $region35
              $region32: #{_dsu_pallas.1} parent=27 // loop_body
                %v157 = vld [vmem:[%s155] sm:$0xff]
                %158 = vst [vmem:[%s156] sm:$0xff] %v157
                %v159 = vld [vmem:[%s155 + $0x8] sm:$0xff]
                %160 = vst [vmem:[%s156 + $0x8] sm:$0xff] %v159
                %v161 = vld [vmem:[%s155 + $0x20] sm:$0xff]
                %162 = vst [vmem:[%s156 + $0x10] sm:$0xff] %v161
                %v163 = vld [vmem:[%s155 + $0x28] sm:$0xff]
                %164 = vst [vmem:[%s156 + $0x18] sm:$0xff] %v163
              $region33: #{_dsu_pallas.1} parent=27 // loop_footer
                %s154 = sadd.s32 1, %s150
              $region34: #{_dsu_pallas.1} parent=27 // loop_footer_branch
                %149 = sbr.rel target = $region30
              $region35: #{_dsu_pallas.1} parent=27 // loop_exit
                _
            $region28: #{_dsu_pallas.1} parent=23 // pred_fallthru
              _
            // Predicated region
            $region36: #{_dsu_pallas.1} parent=23 // pred_check
              _
            $region37: #{_dsu_pallas.1} parent=23 // pred_check_branch
              %166 = sbr.rel target = $region39
            $region38: #{_dsu_pallas.1} parent=23 // pred_region
              _
            $region39: #{_dsu_pallas.1} parent=23 // pred_fallthru
              _
          $region24: #{_dsu_pallas.1} parent=19 // pred_fallthru
            _
          %167 = vnop
        $region20: #{_dsu_pallas.1} parent=15 // pred_fallthru
          _
        // Predicated region
        $region40: #{_dsu_pallas.1} parent=15 // pred_check
          %p168 = pneg %p58
        $region41: #{_dsu_pallas.1} parent=15 // pred_check_branch
          %170 = sbr.rel (%p168) target = $region43
        $region42: #{_dsu_pallas.1} parent=15 // pred_region
          %s171 = sand.u32 %s48, 1
          %s172 = sand.u32 %s48, 1
          %s173 = smul.addr %s172, 16
          %s174 = scalar_lea.vmem [#allocation3], %s173
          %s175 = smul.addr %s12, 8
          %s176 = scalar_lea.vmem %s1, %s175
          // Predicated region
          $region44: #{_dsu_pallas.1} parent=42 // pred_check
            _
          $region45: #{_dsu_pallas.1} parent=42 // pred_check_branch
            %178 = sbr.rel (0) target = $region47
          $region46: #{_dsu_pallas.1} parent=42 // pred_region
            // Predicated region
            $region48: #{_dsu_pallas.1} parent=46 // pred_check
              _
            $region49: #{_dsu_pallas.1} parent=46 // pred_check_branch
              %180 = sbr.rel (0) target = $region51
            $region50: #{_dsu_pallas.1} parent=46 // pred_region
              // Predicated region
              $region63: #{_dsu_pallas.1} parent=50 // pred_check
                _
              $region64: #{_dsu_pallas.1} parent=50 // pred_check_branch
                %198 = sbr.rel (0) target = $region66
              $region65: #{_dsu_pallas.1} parent=50 // pred_region
                loop: start=0, step=1, limit=1
                $region67: #{_dsu_pallas.1} parent=65 // loop_pre_header
                  _
                $region68: #{_dsu_pallas.1} parent=65 // loop_header
                  %s200 = sphi 0, %s204
                  %p201 = scmp.ge.s32.totalorder %s200, 1
                  %s205 = sphi %s176, %s176
                  %s206 = sphi %s174, %s174
                $region69: #{_dsu_pallas.1} parent=65 // loop_header_branch
                  %203 = sbr.rel (%p201) target = $region73
                $region70: #{_dsu_pallas.1} parent=65 // loop_body
                  %v207 = vld [vmem:[%s205] sm:$0xff]
                  %208 = vst [vmem:[%s206] sm:$0xff] %v207
                  %v209 = vld [vmem:[%s205 + $0x10] sm:$0xff]
                  %210 = vst [vmem:[%s206 + $0x8] sm:$0xff] %v209
                $region71: #{_dsu_pallas.1} parent=65 // loop_footer
                  %s204 = sadd.s32 1, %s200
                $region72: #{_dsu_pallas.1} parent=65 // loop_footer_branch
                  %199 = sbr.rel target = $region68
                $region73: #{_dsu_pallas.1} parent=65 // loop_exit
                  _
              $region66: #{_dsu_pallas.1} parent=50 // pred_fallthru
                _
              // Predicated region
              $region74: #{_dsu_pallas.1} parent=50 // pred_check
                _
              $region75: #{_dsu_pallas.1} parent=50 // pred_check_branch
                %212 = sbr.rel target = $region77
              $region76: #{_dsu_pallas.1} parent=50 // pred_region
                _
              $region77: #{_dsu_pallas.1} parent=50 // pred_fallthru
                _
            $region51: #{_dsu_pallas.1} parent=46 // pred_fallthru
              _
            // Predicated region
            $region52: #{_dsu_pallas.1} parent=46 // pred_check
              _
            $region53: #{_dsu_pallas.1} parent=46 // pred_check_branch
              %182 = sbr.rel target = $region55
            $region54: #{_dsu_pallas.1} parent=46 // pred_region
              %s184 = ssub.s32 256, 1
              loop: start=0, step=1, limit=1
              $region56: #{_dsu_pallas.1} parent=54 // loop_pre_header
                _
              $region57: #{_dsu_pallas.1} parent=54 // loop_header
                %s186 = sphi 0, %s190
                %p187 = scmp.ge.s32.totalorder %s186, 1
                %s191 = sphi %s176, %s176
                %s192 = sphi %s174, %s174
              $region58: #{_dsu_pallas.1} parent=54 // loop_header_branch
                %189 = sbr.rel (%p187) target = $region62
              $region59: #{_dsu_pallas.1} parent=54 // loop_body
                %v193 = vld [vmem:[%s191] sm:%s184]
                %194 = vst [vmem:[%s192] sm:%s184] %v193
                %v195 = vld [vmem:[%s191 + $0x10] sm:%s184]
                %196 = vst [vmem:[%s192 + $0x8] sm:%s184] %v195
              $region60: #{_dsu_pallas.1} parent=54 // loop_footer
                %s190 = sadd.s32 1, %s186
              $region61: #{_dsu_pallas.1} parent=54 // loop_footer_branch
                %185 = sbr.rel target = $region57
              $region62: #{_dsu_pallas.1} parent=54 // loop_exit
                _
            $region55: #{_dsu_pallas.1} parent=46 // pred_fallthru
              _
          $region47: #{_dsu_pallas.1} parent=42 // pred_fallthru
            _
          %213 = vnop
        $region43: #{_dsu_pallas.1} parent=15 // pred_fallthru
          _
        // Predicated region
        $region78: #{_dsu_pallas.1} parent=15 // pred_check
          %p214 = pneg %p84
        $region79: #{_dsu_pallas.1} parent=15 // pred_check_branch
          %216 = sbr.rel (%p214) target = $region81
        $region80: #{_dsu_pallas.1} parent=15 // pred_region
          %s217 = sand.u32 %s74, 1
          %s218 = sand.u32 %s74, 1
          %s219 = smul.addr %s218, 16
          %s220 = scalar_lea.vmem [#allocation4], %s219
          %s221 = smul.addr %s12, 8
          %s222 = scalar_lea.vmem %s2, %s221
          // Predicated region
          $region82: #{_dsu_pallas.1} parent=80 // pred_check
            _
          $region83: #{_dsu_pallas.1} parent=80 // pred_check_branch
            %224 = sbr.rel (0) target = $region85
          $region84: #{_dsu_pallas.1} parent=80 // pred_region
            // Predicated region
            $region86: #{_dsu_pallas.1} parent=84 // pred_check
              _
            $region87: #{_dsu_pallas.1} parent=84 // pred_check_branch
              %226 = sbr.rel (0) target = $region89
            $region88: #{_dsu_pallas.1} parent=84 // pred_region
              // Predicated region
              $region101: #{_dsu_pallas.1} parent=88 // pred_check
                _
              $region102: #{_dsu_pallas.1} parent=88 // pred_check_branch
                %244 = sbr.rel (0) target = $region104
              $region103: #{_dsu_pallas.1} parent=88 // pred_region
                loop: start=0, step=1, limit=1
                $region105: #{_dsu_pallas.1} parent=103 // loop_pre_header
                  _
                $region106: #{_dsu_pallas.1} parent=103 // loop_header
                  %s246 = sphi 0, %s250
                  %p247 = scmp.ge.s32.totalorder %s246, 1
                  %s251 = sphi %s222, %s222
                  %s252 = sphi %s220, %s220
                $region107: #{_dsu_pallas.1} parent=103 // loop_header_branch
                  %249 = sbr.rel (%p247) target = $region111
                $region108: #{_dsu_pallas.1} parent=103 // loop_body
                  %v253 = vld [vmem:[%s251] sm:$0xff]
                  %254 = vst [vmem:[%s252] sm:$0xff] %v253
                  %v255 = vld [vmem:[%s251 + $0x10] sm:$0xff]
                  %256 = vst [vmem:[%s252 + $0x8] sm:$0xff] %v255
                $region109: #{_dsu_pallas.1} parent=103 // loop_footer
                  %s250 = sadd.s32 1, %s246
                $region110: #{_dsu_pallas.1} parent=103 // loop_footer_branch
                  %245 = sbr.rel target = $region106
                $region111: #{_dsu_pallas.1} parent=103 // loop_exit
                  _
              $region104: #{_dsu_pallas.1} parent=88 // pred_fallthru
                _
              // Predicated region
              $region112: #{_dsu_pallas.1} parent=88 // pred_check
                _
              $region113: #{_dsu_pallas.1} parent=88 // pred_check_branch
                %258 = sbr.rel target = $region115
              $region114: #{_dsu_pallas.1} parent=88 // pred_region
                _
              $region115: #{_dsu_pallas.1} parent=88 // pred_fallthru
                _
            $region89: #{_dsu_pallas.1} parent=84 // pred_fallthru
              _
            // Predicated region
            $region90: #{_dsu_pallas.1} parent=84 // pred_check
              _
            $region91: #{_dsu_pallas.1} parent=84 // pred_check_branch
              %228 = sbr.rel target = $region93
            $region92: #{_dsu_pallas.1} parent=84 // pred_region
              %s230 = ssub.s32 256, 1
              loop: start=0, step=1, limit=1
              $region94: #{_dsu_pallas.1} parent=92 // loop_pre_header
                _
              $region95: #{_dsu_pallas.1} parent=92 // loop_header
                %s232 = sphi 0, %s236
                %p233 = scmp.ge.s32.totalorder %s232, 1
                %s237 = sphi %s222, %s222
                %s238 = sphi %s220, %s220
              $region96: #{_dsu_pallas.1} parent=92 // loop_header_branch
                %235 = sbr.rel (%p233) target = $region100
              $region97: #{_dsu_pallas.1} parent=92 // loop_body
                %v239 = vld [vmem:[%s237] sm:%s230]
                %240 = vst [vmem:[%s238] sm:%s230] %v239
                %v241 = vld [vmem:[%s237 + $0x10] sm:%s230]
                %242 = vst [vmem:[%s238 + $0x8] sm:%s230] %v241
              $region98: #{_dsu_pallas.1} parent=92 // loop_footer
                %s236 = sadd.s32 1, %s232
              $region99: #{_dsu_pallas.1} parent=92 // loop_footer_branch
                %231 = sbr.rel target = $region95
              $region100: #{_dsu_pallas.1} parent=92 // loop_exit
                _
            $region93: #{_dsu_pallas.1} parent=84 // pred_fallthru
              _
          $region85: #{_dsu_pallas.1} parent=80 // pred_fallthru
            _
          %259 = vnop
        $region81: #{_dsu_pallas.1} parent=15 // pred_fallthru
          _
      $region16: #{_dsu_pallas.1} parent=5 // pred_fallthru
        _
      %p260 = scmp.le.s32.totalorder 1, %s12
      %p261 = scmp.lt.s32.totalorder %s12, 3
      %p262 = pnand %p260, %p261
      %p263 = pneg %p262
      // Predicated region
      $region116: #{_dsu_pallas.1} parent=5 // pred_check
        _
      $region117: #{_dsu_pallas.1} parent=5 // pred_check_branch
        %265 = sbr.rel (%p262) target = $region119
      $region118: #{_dsu_pallas.1} parent=5 // pred_region
        %s266 = ssub.s32 %s12, 1
        %s267 = sand.u32 %s25, 1
        %s268 = sand.u32 %s25, 1
        %s269 = smul.addr %s268, 32
        %s270 = scalar_lea.vmem [#allocation2], %s269
        // Predicated region
        $region120: #{_dsu_pallas.1} parent=118 // pred_check
          %p271 = pneg %p38
        $region121: #{_dsu_pallas.1} parent=118 // pred_check_branch
          %273 = sbr.rel (%p271) target = $region123
        $region122: #{_dsu_pallas.1} parent=118 // pred_region
          _
        $region123: #{_dsu_pallas.1} parent=118 // pred_fallthru
          _
        %s274 = sand.u32 %s51, 1
        %s275 = sand.u32 %s51, 1
        %s276 = smul.addr %s275, 16
        %s277 = scalar_lea.vmem [#allocation3], %s276
        // Predicated region
        $region124: #{_dsu_pallas.1} parent=118 // pred_check
          %p278 = pneg %p64
        $region125: #{_dsu_pallas.1} parent=118 // pred_check_branch
          %280 = sbr.rel (%p278) target = $region127
        $region126: #{_dsu_pallas.1} parent=118 // pred_region
          _
        $region127: #{_dsu_pallas.1} parent=118 // pred_fallthru
          _
        %s281 = sand.u32 %s77, 1
        %s282 = sand.u32 %s77, 1
        %s283 = smul.addr %s282, 16
        %s284 = scalar_lea.vmem [#allocation4], %s283
        // Predicated region
        $region128: #{_dsu_pallas.1} parent=118 // pred_check
          %p285 = pneg %p90
        $region129: #{_dsu_pallas.1} parent=118 // pred_check_branch
          %287 = sbr.rel (%p285) target = $region131
        $region130: #{_dsu_pallas.1} parent=118 // pred_region
          _
        $region131: #{_dsu_pallas.1} parent=118 // pred_fallthru
          _
        %s288 = sand.u32 %s25, 1
        %s289 = sand.u32 %s25, 1
        %s290 = smul.addr %s289, 32
        %s291 = scalar_lea.vmem [#allocation2], %s290
        %p292 = pneg %p38
        %p293 = pneg %p35
        %s294 = sand.u32 %s51, 1
        %s295 = sand.u32 %s51, 1
        %s296 = smul.addr %s295, 16
        %s297 = scalar_lea.vmem [#allocation3], %s296
        %p298 = pneg %p64
        %p299 = pneg %p61
        %s300 = sand.u32 %s77, 1
        %s301 = sand.u32 %s77, 1
        %s302 = smul.addr %s301, 16
        %s303 = scalar_lea.vmem [#allocation4], %s302
        %p304 = pneg %p90
        %p305 = pneg %p87
        %p306 = pneg %p116
        %p307 = pneg %p113
        %s308 = sand.u32 %s103, 1
        %s309 = scalar_lea.sflag [#allocation6], %s308
        %s310 = sand.u32 %s103, 1
        %s311 = smul.addr %s310, 32
        %s312 = scalar_lea.vmem [#allocation5], %s311
        %v313 = vld [vmem:[%s270] sm:$0xff]
        %v314 = vld [vmem:[%s270 + $0x8] sm:$0xff]
        %v315 = vld [vmem:[%s270 + $0x10] sm:$0xff]
        %v316 = vld [vmem:[%s270 + $0x18] sm:$0xff]
        %v317 = vadd.f32 %v313, %v314
        %318 = vadd.xlane.f32.xlu0 %v317
        %v319 = vpop.xlane.xlu0 %318
        %v320 = vadd.f32 %v315, %v316
        %321 = vadd.xlane.f32.xlu0 %v320
        %v322 = vpop.xlane.xlu0 %321
        %v323 = vmul.f32 %v313, %v313
        %v324 = vmul.f32 %v314, %v314
        %v325 = vmul.f32 %v315, %v315
        %v326 = vmul.f32 %v316, %v316
        %v327 = vadd.f32 %v323, %v324
        %328 = vadd.xlane.f32.xlu0 %v327
        %v329 = vpop.xlane.xlu0 %328
        %v330 = vadd.f32 %v325, %v326
        %331 = vadd.xlane.f32.xlu0 %v330
        %v332 = vpop.xlane.xlu0 %331
        %v333 = vmul.f32 %v319, 0.00390625
        %v334 = vmul.f32 %v322, 0.00390625
        %v335 = vmul.f32 %v333, %v319
        %v336 = vmul.f32 %v334, %v322
        %v337 = vsub.f32 %v329, %v335
        %v338 = vsub.f32 %v332, %v336
        %v339 = vmul.f32 %v337, 0.003921569
        %v340 = vmul.f32 %v338, 0.003921569
        %v341 = vmax.f32 %v339, 0.0
        %v342 = vmax.f32 %v340, 0.0
        %v343 = vadd.f32 %v341, 1e-06
        %v344 = vadd.f32 %v342, 1e-06
        %v345 = vrsqrt.pop %v343
        %v346 = vmul.f32 %v345, %v343
        %v347 = vmul.f32 %v346, %v345
        %v348 = vmul.f32 0.5, %v347
        %v349 = vsub.f32 1.5, %v348
        %v350 = vmul.f32 %v345, %v349
        %v351 = vmul.f32 %v343, %v350
        %vm352 = vcmp.eq.f32.partialorder %v343, inf
        %v353 = vsel %vm352, %v343, %v351
        %vm354 = vcmp.eq.f32.partialorder %v343, 0.0
        %v355 = vand.u32 %v343, 2147483648
        %v356 = vsel %vm354, %v355, %v353
        %v357 = vrsqrt.pop %v344
        %v358 = vmul.f32 %v357, %v344
        %v359 = vmul.f32 %v358, %v357
        %v360 = vmul.f32 0.5, %v359
        %v361 = vsub.f32 1.5, %v360
        %v362 = vmul.f32 %v357, %v361
        %v363 = vmul.f32 %v344, %v362
        %vm364 = vcmp.eq.f32.partialorder %v344, inf
        %v365 = vsel %vm364, %v344, %v363
        %vm366 = vcmp.eq.f32.partialorder %v344, 0.0
        %v367 = vand.u32 %v344, 2147483648
        %v368 = vsel %vm366, %v367, %v365
        %v369 = vadd.f32 %v333, %v334
        %v370 = vrcp.pop 2.0
        %v371 = vmul.f32 2.0, %v370
        %v372 = vsub.f32 1.0, %v371
        %v373 = vmul.f32 %v370, %v372
        %v374 = vadd.f32 %v370, %v373
        %vm375 = vweird.f32 %v370
        %v376 = vsel %vm375, %v370, %v374
        %v377 = vmul.f32 %v369, %v376
        %v378 = vsub.f32 %v333, %v377
        %v379 = vsub.f32 %v334, %v377
        %v380 = vmul.f32 %v378, %v378
        %v381 = vmul.f32 %v379, %v379
        %v382 = vadd.f32 %v380, %v381
        %v383 = vadd.f32 %v382, 1e-06
        %v384 = vrsqrt.pop %v383
        %v385 = vmul.f32 %v384, %v383
        %v386 = vmul.f32 %v385, %v384
        %v387 = vmul.f32 0.5, %v386
        %v388 = vsub.f32 1.5, %v387
        %v389 = vmul.f32 %v384, %v388
        %v390 = vmul.f32 %v383, %v389
        %vm391 = vcmp.eq.f32.partialorder %v383, inf
        %v392 = vsel %vm391, %v383, %v390
        %vm393 = vcmp.eq.f32.partialorder %v383, 0.0
        %v394 = vand.u32 %v383, 2147483648
        %v395 = vsel %vm393, %v394, %v392
        %v396 = vadd.f32 %v356, %v368
        %v397 = vmul.f32 %v396, %v376
        %v398 = vsub.f32 %v356, %v397
        %v399 = vsub.f32 %v368, %v397
        %v400 = vmul.f32 %v398, %v398
        %v401 = vmul.f32 %v399, %v399
        %v402 = vadd.f32 %v400, %v401
        %v403 = vadd.f32 %v402, 1e-06
        %v404 = vrsqrt.pop %v403
        %v405 = vmul.f32 %v404, %v403
        %v406 = vmul.f32 %v405, %v404
        %v407 = vmul.f32 0.5, %v406
        %v408 = vsub.f32 1.5, %v407
        %v409 = vmul.f32 %v404, %v408
        %v410 = vmul.f32 %v403, %v409
        %vm411 = vcmp.eq.f32.partialorder %v403, inf
        %v412 = vsel %vm411, %v403, %v410
        %vm413 = vcmp.eq.f32.partialorder %v403, 0.0
        %v414 = vand.u32 %v403, 2147483648
        %v415 = vsel %vm413, %v414, %v412
        %v416 = vld [vmem:[%s277] sm:$0xff]
        %v417 = vld [vmem:[%s277 + $0x8] sm:$0xff]
        %v418 = vmul.f32 %v416, %v395
        %v419 = vmul.f32 %v417, %v395
        %v420 = vadd.f32 %v333, %v418
        %v421 = vadd.f32 %v334, %v419
        %v422 = vld [vmem:[%s284] sm:$0xff]
        %v423 = vld [vmem:[%s284 + $0x8] sm:$0xff]
        %v424 = vmul.f32 %v422, %v415
        %v425 = vmul.f32 %v423, %v415
        %v426 = vadd.f32 %v356, %v424
        %v427 = vadd.f32 %v368, %v425
        %v428 = vrcp.pop %v356
        %v429 = vrcp.pop %v368
        %v430 = vmul.f32 %v356, %v428
        %v431 = vmul.f32 %v368, %v429
        %v432 = vsub.f32 2.0, %v430
        %v433 = vsub.f32 2.0, %v431
        %v434 = vmul.f32 %v428, %v432
        %v435 = vmul.f32 %v429, %v433
        %v436 = vmul.f32 %v426, %v434
        %v437 = vmul.f32 %v427, %v435
        %v438 = vmul.f32 %v333, %v436
        %v439 = vmul.f32 %v334, %v437
        %v440 = vsub.f32 %v420, %v438
        %v441 = vsub.f32 %v421, %v439
        %443 = vset.pattern.permute.xlu0 0
        %444 = vperm.xlu0 %443, %v436
        %v445 = vpop.permute.xlu0 %444
        %448 = vset.pattern.permute.xlu0 0
        %449 = vperm.xlu0 %448, %v437
        %v450 = vpop.permute.xlu0 %449
        %v452 = vmul.f32 %v313, %v445
        %v453 = vmul.f32 %v314, %v445
        %v454 = vmul.f32 %v315, %v450
        %v455 = vmul.f32 %v316, %v450
        %457 = vset.pattern.permute.xlu0 0
        %458 = vperm.xlu0 %457, %v440
        %v459 = vpop.permute.xlu0 %458
        %462 = vset.pattern.permute.xlu0 0
        %463 = vperm.xlu0 %462, %v441
        %v464 = vpop.permute.xlu0 %463
        %v466 = vadd.f32 %v452, %v459
        %v467 = vadd.f32 %v453, %v459
        %v468 = vadd.f32 %v454, %v464
        %v469 = vadd.f32 %v455, %v464
        %470 = vst [vmem:[%s312] sm:$0xff] %v466
        %471 = vst [vmem:[%s312 + $0x8] sm:$0xff] %v467
        %472 = vst [vmem:[%s312 + $0x10] sm:$0xff] %v468
        %473 = vst [vmem:[%s312 + $0x18] sm:$0xff] %v469
        %s474 = sand.u32 %s103, 1
        %s475 = scalar_lea.sflag [#allocation6], %s474
        %s476 = sand.u32 %s103, 1
        %s477 = smul.addr %s476, 32
        %s478 = scalar_lea.vmem [#allocation5], %s477
        // Predicated region
        $region132: #{_dsu_pallas.1} parent=118 // pred_check
          %p479 = pneg %p113
        $region133: #{_dsu_pallas.1} parent=118 // pred_check_branch
          %481 = sbr.rel (%p479) target = $region135
        $region134: #{_dsu_pallas.1} parent=118 // pred_region
          %483 = vsyncadd %s475, 0
          %s484 = smul.addr %s17, 2
          %s485 = smul.addr %s484, 8
          %s486 = scalar_lea.hbm %s3, %s485
          %s487 = sshll.u32 %s478, 4
          %s488 = int_to_ptr.vmem [resolvable:$true] %s487
          %s489 = sshll.u32 %s486, 4
          %s490 = int_to_ptr.hbm [resolvable:$true] %s489
          %495 = dma.vmem_to_hbm [thread:$0]  %s488, 512, %s490, %s475, 256, 512, 16
        $region135: #{_dsu_pallas.1} parent=118 // pred_fallthru
          _
      $region119: #{_dsu_pallas.1} parent=5 // pred_fallthru
        _
      %p496 = scmp.le.s32.totalorder 2, %s12
      // Predicated region
      $region136: #{_dsu_pallas.1} parent=5 // pred_check
        %p497 = pneg %p496
      $region137: #{_dsu_pallas.1} parent=5 // pred_check_branch
        %499 = sbr.rel (%p497) target = $region139
      $region138: #{_dsu_pallas.1} parent=5 // pred_region
        %s500 = ssub.s32 %s12, 2
        // Predicated region
        $region140: #{_dsu_pallas.1} parent=138 // pred_check
          %p501 = pneg %p119
        $region141: #{_dsu_pallas.1} parent=138 // pred_check_branch
          %503 = sbr.rel (%p501) target = $region143
        $region142: #{_dsu_pallas.1} parent=138 // pred_region
          %s504 = sand.u32 %s104, 1
          %s505 = scalar_lea.sflag [#allocation6], %s504
          %s506 = sand.u32 %s104, 1
          %s507 = smul.addr %s506, 32
          %s508 = scalar_lea.vmem [#allocation5], %s507
          %510 = dma.done %s505, 512
        $region143: #{_dsu_pallas.1} parent=138 // pred_fallthru
          _
      $region139: #{_dsu_pallas.1} parent=5 // pred_fallthru
        _
    $region6: #{_dsu_pallas.1} parent=1 // loop_footer
      %s16 = sadd.s32 1, %s12
    $region7: #{_dsu_pallas.1} parent=1 // loop_footer_branch
      %11 = sbr.rel target = $region3
    $region8: #{_dsu_pallas.1} parent=1 // loop_exit
      _
    %511 = vsyncpa [#allocation6], 1
    %s512 = scalar_lea.sflag [#allocation6], 1
    %513 = vsyncpa %s512, 1

</llo_original>
